<compile_context>
chip_gen: v6e
topology: v6e:2x2x1
jax: 0.10.0
libtpu: 0.0.40
codegen_flags: <defaults>
</compile_context>

<pallas_src>
import jax
import jax.numpy as jnp
from jax.experimental import pallas as pl
from jax.experimental.pallas import tpu as pltpu

_LANE = 128
_ROW_ALIGN = 16          # bf16 sublane packing
_LEAKY_SLOPE = 0.01      # torch.nn.LeakyReLU default


def _round_up(v, m):
    return (v + m - 1) // m * m


def _cdiv(a, b):
    return (a + b - 1) // b


def _vmem_caps():
    """(physical VMEM bytes, safe scoped-limit cap) for the current TPU generation."""
    try:
        phys = int(pltpu.get_tpu_info().vmem_capacity_bytes)
    except Exception:
        phys = 64 << 20
    if phys <= (64 << 20):          # v7x: 64 MiB / TC -> leave headroom for compiler scratch
        return phys, 52 << 20
    return phys, 100 << 20          # v5e / v6e: 128 MiB physical (default scoped 16/32 MiB)


def _make_kernel(num_layers, widths_pad, slope=_LEAKY_SLOPE):
    """Fused MLP kernel.  Refs: x, w_0..w_{L-1}, bias_pack, y.

    widths_pad[i] = padded (multiple-of-128) output width of layer i.
    """

    def kernel(*refs):
        x_ref = refs[0]
        w_refs = refs[1:1 + num_layers]
        b_ref = refs[1 + num_layers]
        y_ref = refs[2 + num_layers]

        h = x_ref[...]                                        # bf16 [tr, d_in_pad]
        for li in range(num_layers):
            w = widths_pad[li]
            # bf16 MXU matmul, f32 accumulation.
            acc = jnp.dot(h, w_refs[li][...], preferred_element_type=jnp.float32)
            acc = acc + b_ref[li:li + 1, :w]                  # full-lane f32 bias add
            if li < num_layers - 1:
                # LeakyReLU (Dropout(0.1) is identity in eval mode), then drop to bf16
                # to halve live vreg/VMEM pressure before the next matmul.
                acc = jnp.where(acc >= 0.0, acc, slope * acc)
                h = acc.astype(jnp.bfloat16)
            else:
                h = acc
        y_ref[...] = h.astype(y_ref.dtype)                    # unmasked full-lane store

    return kernel


def mlp_class_forward(x, weights, biases, *, row_tile=512):
    """Pallas forward of mlp_class.  Returns (mlp(x), 0, ones_like(x)).

    weights[i]: [in_i, out_i] f32 (transpose of torch.nn.Linear.weight)
    biases[i] : [out_i]       f32
    """
    orig_dtype = x.dtype
    lead_shape = x.shape[:-1]
    d_in = int(x.shape[-1])
    num_layers = len(weights)
    layer_out = [int(w.shape[1]) for w in weights]
    d_out = layer_out[-1]

    # ---- lane-dense layout: pad d_in, every hidden width and d_out to 128 lanes ----
    d_in_pad = _round_up(d_in, _LANE)
    widths_pad = [_round_up(w, _LANE) for w in layer_out]
    in_pads = [d_in_pad] + widths_pad[:-1]
    out_pad = widths_pad[-1]

    rows = 1
    for s in lead_shape:
        rows *= int(s)
    rows = max(rows, 1)

    # ---- row tile: multiple of 16, minimal padding, >= 2 grid steps when possible ----
    n_tiles = max(1, _cdiv(rows, row_tile))
    tr = _round_up(_cdiv(rows, n_tiles), _ROW_ALIGN)
    rows_pad = _round_up(rows, tr)
    if rows_pad // tr == 1 and tr >= 2 * _ROW_ALIGN:
        # v7x has 2 TensorCores; make the "parallel" grid axis have at least 2 steps.
        tr = _round_up(tr // 2, _ROW_ALIGN)
        rows_pad = _round_up(rows, tr)

    # ---- VMEM budget (generation-aware) ----
    phys_vmem, cap = _vmem_caps()
    weight_bytes = sum(ip * op * 2 for ip, op in zip(in_pads, widths_pad))  # bf16, 1 buffer
    b_width = max(widths_pad)
    bias_bytes = num_layers * b_width * 4
    out_itemsize = jnp.dtype(orig_dtype).itemsize
    max_width = max([d_in_pad] + widths_pad)

    def footprint(t):
        x_tile = 2 * t * d_in_pad * 2              # double-buffered bf16 x tile
        y_tile = 2 * t * out_pad * out_itemsize    # double-buffered out tile
        act = t * max_width * (4 + 2)              # live f32 accumulator + bf16 copy
        return weight_bytes + bias_bytes + x_tile + y_tile + 2 * act

    while footprint(tr) > cap and tr > _ROW_ALIGN:
        tr = max(_ROW_ALIGN, _round_up(tr // 2, _ROW_ALIGN))
        rows_pad = _round_up(rows, tr)

    # Headroom also covers the double-buffered-weights fallback path below.
    vmem_limit = int(min(cap, max(4 << 20,
                                  footprint(tr) + weight_bytes + bias_bytes + (4 << 20))))

    # ---- wrapper-side layout glue (pad + cast) ----
    x2 = x.reshape(rows, d_in)
    x_bf = jnp.pad(x2, ((0, rows_pad - rows), (0, d_in_pad - d_in))).astype(jnp.bfloat16)

    w_bf = []
    for li, w in enumerate(weights):
        wp = jnp.pad(w, ((0, in_pads[li] - int(w.shape[0])),
                         (0, widths_pad[li] - int(w.shape[1]))))
        w_bf.append(wp.astype(jnp.bfloat16))

    # Pack all biases into ONE f32 slab (zero in padded lanes) -> one DMA descriptor.
    b_pack = jnp.zeros((num_layers, b_width), jnp.float32)
    for li, b in enumerate(biases):
        b_pack = b_pack.at[li, :int(b.shape[-1])].set(b.astype(jnp.float32))

    grid = (rows_pad // tr,)
    x_spec = pl.BlockSpec((tr, d_in_pad), lambda i: (i, 0))
    out_spec = pl.BlockSpec((tr, out_pad), lambda i: (i, 0))

    def resident_specs(single_buffer):
        cm = lambda i: (0, 0)
        shapes = [w.shape for w in w_bf] + [b_pack.shape]
        if single_buffer:
            try:
                return [pl.BlockSpec(s, cm, pipeline_mode=pl.Buffered(1)) for s in shapes]
            except Exception:
                pass
        return [pl.BlockSpec(s, cm) for s in shapes]

    flops = 2 * rows_pad * sum(ip * op for ip, op in zip(in_pads, widths_pad))
    bytes_accessed = (rows_pad * d_in_pad * 2 + weight_bytes + bias_bytes
                      + rows_pad * out_pad * out_itemsize)
    cost = pl.CostEstimate(flops=flops, transcendentals=0, bytes_accessed=bytes_accessed)

    kernel = _make_kernel(num_layers, widths_pad)

    def run(specs):
        return pl.pallas_call(
            kernel,
            out_shape=jax.ShapeDtypeStruct((rows_pad, out_pad), orig_dtype),
            grid=grid,
            in_specs=[x_spec] + specs,
            out_specs=out_spec,
            compiler_params=pltpu.CompilerParams(
                dimension_semantics=("parallel",),
                vmem_limit_bytes=vmem_limit,
            ),
            cost_estimate=cost,
        )(x_bf, *w_bf, b_pack)

    try:
        y_pad = run(resident_specs(single_buffer=True))
    except Exception:
        # Fallback: default (double-buffered) resident weights if Buffered(1) is unsupported.
        y_pad = run(resident_specs(single_buffer=False))

    y = y_pad[:rows, :d_out].reshape(*lead_shape, d_out)
    # Module forward returns (model(x), 0, torch.ones_like(x)); the latter two are
    # trivial constants produced in the wrapper.
    return y, 0, jnp.ones_like(x)


# ---------------------------------------------------------------------------
# Parameter init (torch.nn.Linear default: U(-1/sqrt(in), 1/sqrt(in))).
# ---------------------------------------------------------------------------
def init_mlp_params(key, input_size, output_size=1, *, hidden_size=None,
                    num_layers=4, layer_sizes=None):
    if hidden_size is None:
        hidden_size = input_size
    if layer_sizes is None:
        layer_sizes = [hidden_size] * (num_layers - 1) + [output_size]
    dims = [input_size] + list(layer_sizes)
    weights, biases = [], []
    keys = jax.random.split(key, len(dims) - 1)
    for k, (din, dout) in zip(keys, zip(dims[:-1], dims[1:])):
        kw, kb = jax.random.split(k)
        bound = 1.0 / (din ** 0.5)
        weights.append(jax.random.uniform(kw, (din, dout), jnp.float32, -bound, bound))
        biases.append(jax.random.uniform(kb, (dout,), jnp.float32, -bound, bound))
    return weights, biases


def _reference(x, weights, biases, slope=_LEAKY_SLOPE):
    """Pure-JAX f32 reference of mlp_class.forward (eval mode)."""
    h = x
    n = len(weights)
    for li, (w, b) in enumerate(zip(weights, biases)):
        h = h @ w + b
        if li < n - 1:
            h = jnp.where(h >= 0, h, slope * h)
    return h, 0, jnp.ones_like(x)


if __name__ == "__main__":
    # Small shapes consistent with the module: x [batch=2, seq=8, input_size=32],
    # default num_layers=4 -> hidden=input_size=32, output_size=8.
    B, S, d_in, d_out = 2, 8, 32, 8

    key = jax.random.PRNGKey(0)
    kx, kp = jax.random.split(key)
    x = jax.random.normal(kx, (B, S, d_in), jnp.float32)
    weights, biases = init_mlp_params(kp, d_in, d_out, num_layers=4)

    y, zero, ones = mlp_class_forward(x, weights, biases)
    jax.block_until_ready((y, ones))

    # Sanity check against the pure-JAX f32 reference.
    ry, rzero, rones = _reference(x, weights, biases)
    assert y.shape == (B, S, d_out)
    assert zero == 0 and rzero == 0
    assert bool(jnp.array_equal(ones, rones))
    # bf16 weights/activations with f32 accumulation -> slightly looser tolerance.
    assert jnp.allclose(y, ry, rtol=2e-2, atol=2e-2), float(jnp.max(jnp.abs(y - ry)))

    print("KERNEL_OK")
</pallas_src>

<mosaic_0001>
module attributes {stable_mosaic.version = 11 : i64} {
  func.func @kernel(%arg0: i32, %arg1: memref<16x128xbf16, #tpu.memory_space<vmem>>, %arg2: memref<128x128xbf16, #tpu.memory_space<vmem>>, %arg3: memref<128x128xbf16, #tpu.memory_space<vmem>>, %arg4: memref<128x128xbf16, #tpu.memory_space<vmem>>, %arg5: memref<128x128xbf16, #tpu.memory_space<vmem>>, %arg6: memref<4x128xf32, #tpu.memory_space<vmem>>, %arg7: memref<16x128xf32, #tpu.memory_space<vmem>>) attributes {dimension_semantics = [#tpu.dimension_semantics<parallel>], iteration_bounds = array<i64: 1>, scalar_prefetch = 0 : i64, scratch_operands = 0 : i64, tpu.core_type = #tpu.core_type<tc>, window_params = [{transform_indices = @transform_0, window_bounds = array<i64: 16, 128>}, {pipeline_mode = #tpu.pipeline_mode<synchronous>, transform_indices = @transform_1, window_bounds = array<i64: 128, 128>}, {pipeline_mode = #tpu.pipeline_mode<synchronous>, transform_indices = @transform_2, window_bounds = array<i64: 128, 128>}, {pipeline_mode = #tpu.pipeline_mode<synchronous>, transform_indices = @transform_3, window_bounds = array<i64: 128, 128>}, {pipeline_mode = #tpu.pipeline_mode<synchronous>, transform_indices = @transform_4, window_bounds = array<i64: 128, 128>}, {pipeline_mode = #tpu.pipeline_mode<synchronous>, transform_indices = @transform_5, window_bounds = array<i64: 4, 128>}, {transform_indices = @transform_6, window_bounds = array<i64: 16, 128>}]} {
    %c0 = arith.constant 0 : index
    %c0_0 = arith.constant 0 : index
    %0 = vector.load %arg1[%c0, %c0_0] : memref<16x128xbf16, #tpu.memory_space<vmem>>, vector<16x128xbf16>
    %c0_1 = arith.constant 0 : index
    %c0_2 = arith.constant 0 : index
    %1 = vector.load %arg2[%c0_1, %c0_2] : memref<128x128xbf16, #tpu.memory_space<vmem>>, vector<128x128xbf16>
    %cst = arith.constant dense<0.000000e+00> : vector<16x128xf32>
    %2 = tpu.matmul %0, %1, %cst {dimension_numbers = #tpu.dot_dimension_numbers<[1], [0], [0], [1], [0, 0, 1, 1], [], []>} : vector<16x128xbf16>, vector<128x128xbf16>, vector<16x128xf32> -> vector<16x128xf32>
    %c0_3 = arith.constant 0 : index
    %c0_4 = arith.constant 0 : index
    %3 = vector.load %arg6[%c0_3, %c0_4] : memref<4x128xf32, #tpu.memory_space<vmem>>, vector<1x128xf32>
    %4 = vector.broadcast %3 : vector<1x128xf32> to vector<16x128xf32>
    %5 = arith.addf %2, %4 : vector<16x128xf32>
    %cst_5 = arith.constant 0.000000e+00 : f32
    %6 = vector.broadcast %cst_5 : f32 to vector<16x128xf32>
    %7 = arith.cmpf oge, %5, %6 : vector<16x128xf32>
    %cst_6 = arith.constant 0.00999999977 : f32
    %8 = vector.broadcast %cst_6 : f32 to vector<16x128xf32>
    %9 = arith.mulf %8, %5 : vector<16x128xf32>
    %10 = arith.select %7, %5, %9 : vector<16x128xi1>, vector<16x128xf32>
    %11 = arith.truncf %10 : vector<16x128xf32> to vector<16x128xbf16>
    %c0_7 = arith.constant 0 : index
    %c0_8 = arith.constant 0 : index
    %12 = vector.load %arg3[%c0_7, %c0_8] : memref<128x128xbf16, #tpu.memory_space<vmem>>, vector<128x128xbf16>
    %cst_9 = arith.constant dense<0.000000e+00> : vector<16x128xf32>
    %13 = tpu.matmul %11, %12, %cst_9 {dimension_numbers = #tpu.dot_dimension_numbers<[1], [0], [0], [1], [0, 0, 1, 1], [], []>} : vector<16x128xbf16>, vector<128x128xbf16>, vector<16x128xf32> -> vector<16x128xf32>
    %c1 = arith.constant 1 : index
    %c0_10 = arith.constant 0 : index
    %14 = vector.load %arg6[%c1, %c0_10] : memref<4x128xf32, #tpu.memory_space<vmem>>, vector<1x128xf32>
    %15 = vector.broadcast %14 : vector<1x128xf32> to vector<16x128xf32>
    %16 = arith.addf %13, %15 : vector<16x128xf32>
    %cst_11 = arith.constant 0.000000e+00 : f32
    %17 = vector.broadcast %cst_11 : f32 to vector<16x128xf32>
    %18 = arith.cmpf oge, %16, %17 : vector<16x128xf32>
    %cst_12 = arith.constant 0.00999999977 : f32
    %19 = vector.broadcast %cst_12 : f32 to vector<16x128xf32>
    %20 = arith.mulf %19, %16 : vector<16x128xf32>
    %21 = arith.select %18, %16, %20 : vector<16x128xi1>, vector<16x128xf32>
    %22 = arith.truncf %21 : vector<16x128xf32> to vector<16x128xbf16>
    %c0_13 = arith.constant 0 : index
    %c0_14 = arith.constant 0 : index
    %23 = vector.load %arg4[%c0_13, %c0_14] : memref<128x128xbf16, #tpu.memory_space<vmem>>, vector<128x128xbf16>
    %cst_15 = arith.constant dense<0.000000e+00> : vector<16x128xf32>
    %24 = tpu.matmul %22, %23, %cst_15 {dimension_numbers = #tpu.dot_dimension_numbers<[1], [0], [0], [1], [0, 0, 1, 1], [], []>} : vector<16x128xbf16>, vector<128x128xbf16>, vector<16x128xf32> -> vector<16x128xf32>
    %c2 = arith.constant 2 : index
    %c0_16 = arith.constant 0 : index
    %25 = vector.load %arg6[%c2, %c0_16] : memref<4x128xf32, #tpu.memory_space<vmem>>, vector<1x128xf32>
    %26 = vector.broadcast %25 : vector<1x128xf32> to vector<16x128xf32>
    %27 = arith.addf %24, %26 : vector<16x128xf32>
    %cst_17 = arith.constant 0.000000e+00 : f32
    %28 = vector.broadcast %cst_17 : f32 to vector<16x128xf32>
    %29 = arith.cmpf oge, %27, %28 : vector<16x128xf32>
    %cst_18 = arith.constant 0.00999999977 : f32
    %30 = vector.broadcast %cst_18 : f32 to vector<16x128xf32>
    %31 = arith.mulf %30, %27 : vector<16x128xf32>
    %32 = arith.select %29, %27, %31 : vector<16x128xi1>, vector<16x128xf32>
    %33 = arith.truncf %32 : vector<16x128xf32> to vector<16x128xbf16>
    %c0_19 = arith.constant 0 : index
    %c0_20 = arith.constant 0 : index
    %34 = vector.load %arg5[%c0_19, %c0_20] : memref<128x128xbf16, #tpu.memory_space<vmem>>, vector<128x128xbf16>
    %cst_21 = arith.constant dense<0.000000e+00> : vector<16x128xf32>
    %35 = tpu.matmul %33, %34, %cst_21 {dimension_numbers = #tpu.dot_dimension_numbers<[1], [0], [0], [1], [0, 0, 1, 1], [], []>} : vector<16x128xbf16>, vector<128x128xbf16>, vector<16x128xf32> -> vector<16x128xf32>
    %c3 = arith.constant 3 : index
    %c0_22 = arith.constant 0 : index
    %36 = vector.load %arg6[%c3, %c0_22] : memref<4x128xf32, #tpu.memory_space<vmem>>, vector<1x128xf32>
    %37 = vector.broadcast %36 : vector<1x128xf32> to vector<16x128xf32>
    %38 = arith.addf %35, %37 : vector<16x128xf32>
    %c0_23 = arith.constant 0 : index
    %c0_24 = arith.constant 0 : index
    %39 = vector.load %arg7[%c0_23, %c0_24] : memref<16x128xf32, #tpu.memory_space<vmem>>, vector<16x128xf32>
    tpu.vector_store %arg7[%c0_23, %c0_24], %38 {strides = array<i32>} : memref<16x128xf32, #tpu.memory_space<vmem>>, vector<16x128xf32>,
    return
  }
  func.func @transform_0(%arg0: i32) -> (i32, i32) {
    %c0_i32 = arith.constant 0 : i32
    %c0_i32_0 = arith.constant 0 : i32
    return %arg0, %c0_i32 : i32, i32
  }
  func.func @transform_1(%arg0: i32) -> (i32, i32) {
    %c0_i32 = arith.constant 0 : i32
    %c0_i32_0 = arith.constant 0 : i32
    %c0_i32_1 = arith.constant 0 : i32
    return %c0_i32, %c0_i32_0 : i32, i32
  }
  func.func @transform_2(%arg0: i32) -> (i32, i32) {
    %c0_i32 = arith.constant 0 : i32
    %c0_i32_0 = arith.constant 0 : i32
    %c0_i32_1 = arith.constant 0 : i32
    return %c0_i32, %c0_i32_0 : i32, i32
  }
  func.func @transform_3(%arg0: i32) -> (i32, i32) {
    %c0_i32 = arith.constant 0 : i32
    %c0_i32_0 = arith.constant 0 : i32
    %c0_i32_1 = arith.constant 0 : i32
    return %c0_i32, %c0_i32_0 : i32, i32
  }
  func.func @transform_4(%arg0: i32) -> (i32, i32) {
    %c0_i32 = arith.constant 0 : i32
    %c0_i32_0 = arith.constant 0 : i32
    %c0_i32_1 = arith.constant 0 : i32
    return %c0_i32, %c0_i32_0 : i32, i32
  }
  func.func @transform_5(%arg0: i32) -> (i32, i32) {
    %c0_i32 = arith.constant 0 : i32
    %c0_i32_0 = arith.constant 0 : i32
    %c0_i32_1 = arith.constant 0 : i32
    return %c0_i32, %c0_i32_0 : i32, i32
  }
  func.func @transform_6(%arg0: i32) -> (i32, i32) {
    %c0_i32 = arith.constant 0 : i32
    %c0_i32_0 = arith.constant 0 : i32
    return %arg0, %c0_i32 : i32, i32
  }
}

module attributes {stable_mosaic.version = 11 : i64} {
  func.func @kernel(%arg0: i32, %arg1: memref<16x128xbf16, #tpu.memory_space<vmem>>, %arg2: memref<128x128xbf16, #tpu.memory_space<vmem>>, %arg3: memref<128x128xbf16, #tpu.memory_space<vmem>>, %arg4: memref<128x128xbf16, #tpu.memory_space<vmem>>, %arg5: memref<128x128xbf16, #tpu.memory_space<vmem>>, %arg6: memref<4x128xf32, #tpu.memory_space<vmem>>, %arg7: memref<16x128xf32, #tpu.memory_space<vmem>>) attributes {dimension_semantics = [#tpu.dimension_semantics<parallel>], iteration_bounds = array<i64: 1>, scalar_prefetch = 0 : i64, scratch_operands = 0 : i64, tpu.core_type = #tpu.core_type<tc>, window_params = [{transform_indices = @transform_0, window_bounds = array<i64: 16, 128>}, {pipeline_mode = #tpu.pipeline_mode<synchronous>, transform_indices = @transform_1, window_bounds = array<i64: 128, 128>}, {pipeline_mode = #tpu.pipeline_mode<synchronous>, transform_indices = @transform_2, window_bounds = array<i64: 128, 128>}, {pipeline_mode = #tpu.pipeline_mode<synchronous>, transform_indices = @transform_3, window_bounds = array<i64: 128, 128>}, {pipeline_mode = #tpu.pipeline_mode<synchronous>, transform_indices = @transform_4, window_bounds = array<i64: 128, 128>}, {pipeline_mode = #tpu.pipeline_mode<synchronous>, transform_indices = @transform_5, window_bounds = array<i64: 4, 128>}, {transform_indices = @transform_6, window_bounds = array<i64: 16, 128>}]} {
    %c0 = arith.constant 0 : index
    %c0_0 = arith.constant 0 : index
    %0 = vector.load %arg1[%c0, %c0_0] : memref<16x128xbf16, #tpu.memory_space<vmem>>, vector<16x128xbf16>
    %c0_1 = arith.constant 0 : index
    %c0_2 = arith.constant 0 : index
    %1 = vector.load %arg2[%c0_1, %c0_2] : memref<128x128xbf16, #tpu.memory_space<vmem>>, vector<128x128xbf16>
    %cst = arith.constant dense<0.000000e+00> : vector<16x128xf32>
    %2 = tpu.matmul %0, %1, %cst {dimension_numbers = #tpu.dot_dimension_numbers<[1], [0], [0], [1], [0, 0, 1, 1], [], []>} : vector<16x128xbf16>, vector<128x128xbf16>, vector<16x128xf32> -> vector<16x128xf32>
    %c0_3 = arith.constant 0 : index
    %c0_4 = arith.constant 0 : index
    %3 = vector.load %arg6[%c0_3, %c0_4] : memref<4x128xf32, #tpu.memory_space<vmem>>, vector<1x128xf32>
    %4 = vector.broadcast %3 : vector<1x128xf32> to vector<16x128xf32>
    %5 = arith.addf %2, %4 : vector<16x128xf32>
    %cst_5 = arith.constant 0.000000e+00 : f32
    %6 = vector.broadcast %cst_5 : f32 to vector<16x128xf32>
    %7 = arith.cmpf oge, %5, %6 : vector<16x128xf32>
    %cst_6 = arith.constant 0.00999999977 : f32
    %8 = vector.broadcast %cst_6 : f32 to vector<16x128xf32>
    %9 = arith.mulf %8, %5 : vector<16x128xf32>
    %10 = arith.select %7, %5, %9 : vector<16x128xi1>, vector<16x128xf32>
    %11 = arith.truncf %10 : vector<16x128xf32> to vector<16x128xbf16>
    %c0_7 = arith.constant 0 : index
    %c0_8 = arith.constant 0 : index
    %12 = vector.load %arg3[%c0_7, %c0_8] : memref<128x128xbf16, #tpu.memory_space<vmem>>, vector<128x128xbf16>
    %cst_9 = arith.constant dense<0.000000e+00> : vector<16x128xf32>
    %13 = tpu.matmul %11, %12, %cst_9 {dimension_numbers = #tpu.dot_dimension_numbers<[1], [0], [0], [1], [0, 0, 1, 1], [], []>} : vector<16x128xbf16>, vector<128x128xbf16>, vector<16x128xf32> -> vector<16x128xf32>
    %c1 = arith.constant 1 : index
    %c0_10 = arith.constant 0 : index
    %14 = vector.load %arg6[%c1, %c0_10] : memref<4x128xf32, #tpu.memory_space<vmem>>, vector<1x128xf32>
    %15 = vector.broadcast %14 : vector<1x128xf32> to vector<16x128xf32>
    %16 = arith.addf %13, %15 : vector<16x128xf32>
    %cst_11 = arith.constant 0.000000e+00 : f32
    %17 = vector.broadcast %cst_11 : f32 to vector<16x128xf32>
    %18 = arith.cmpf oge, %16, %17 : vector<16x128xf32>
    %cst_12 = arith.constant 0.00999999977 : f32
    %19 = vector.broadcast %cst_12 : f32 to vector<16x128xf32>
    %20 = arith.mulf %19, %16 : vector<16x128xf32>
    %21 = arith.select %18, %16, %20 : vector<16x128xi1>, vector<16x128xf32>
    %22 = arith.truncf %21 : vector<16x128xf32> to vector<16x128xbf16>
    %c0_13 = arith.constant 0 : index
    %c0_14 = arith.constant 0 : index
    %23 = vector.load %arg4[%c0_13, %c0_14] : memref<128x128xbf16, #tpu.memory_space<vmem>>, vector<128x128xbf16>
    %cst_15 = arith.constant dense<0.000000e+00> : vector<16x128xf32>
    %24 = tpu.matmul %22, %23, %cst_15 {dimension_numbers = #tpu.dot_dimension_numbers<[1], [0], [0], [1], [0, 0, 1, 1], [], []>} : vector<16x128xbf16>, vector<128x128xbf16>, vector<16x128xf32> -> vector<16x128xf32>
    %c2 = arith.constant 2 : index
    %c0_16 = arith.constant 0 : index
    %25 = vector.load %arg6[%c2, %c0_16] : memref<4x128xf32, #tpu.memory_space<vmem>>, vector<1x128xf32>
    %26 = vector.broadcast %25 : vector<1x128xf32> to vector<16x128xf32>
    %27 = arith.addf %24, %26 : vector<16x128xf32>
    %cst_17 = arith.constant 0.000000e+00 : f32
    %28 = vector.broadcast %cst_17 : f32 to vector<16x128xf32>
    %29 = arith.cmpf oge, %27, %28 : vector<16x128xf32>
    %cst_18 = arith.constant 0.00999999977 : f32
    %30 = vector.broadcast %cst_18 : f32 to vector<16x128xf32>
    %31 = arith.mulf %30, %27 : vector<16x128xf32>
    %32 = arith.select %29, %27, %31 : vector<16x128xi1>, vector<16x128xf32>
    %33 = arith.truncf %32 : vector<16x128xf32> to vector<16x128xbf16>
    %c0_19 = arith.constant 0 : index
    %c0_20 = arith.constant 0 : index
    %34 = vector.load %arg5[%c0_19, %c0_20] : memref<128x128xbf16, #tpu.memory_space<vmem>>, vector<128x128xbf16>
    %cst_21 = arith.constant dense<0.000000e+00> : vector<16x128xf32>
    %35 = tpu.matmul %33, %34, %cst_21 {dimension_numbers = #tpu.dot_dimension_numbers<[1], [0], [0], [1], [0, 0, 1, 1], [], []>} : vector<16x128xbf16>, vector<128x128xbf16>, vector<16x128xf32> -> vector<16x128xf32>
    %c3 = arith.constant 3 : index
    %c0_22 = arith.constant 0 : index
    %36 = vector.load %arg6[%c3, %c0_22] : memref<4x128xf32, #tpu.memory_space<vmem>>, vector<1x128xf32>
    %37 = vector.broadcast %36 : vector<1x128xf32> to vector<16x128xf32>
    %38 = arith.addf %35, %37 : vector<16x128xf32>
    %c0_23 = arith.constant 0 : index
    %c0_24 = arith.constant 0 : index
    %39 = vector.load %arg7[%c0_23, %c0_24] : memref<16x128xf32, #tpu.memory_space<vmem>>, vector<16x128xf32>
    tpu.vector_store %arg7[%c0_23, %c0_24], %38 {strides = array<i32>} : memref<16x128xf32, #tpu.memory_space<vmem>>, vector<16x128xf32>,
    return
  }
  func.func @transform_0(%arg0: i32) -> (i32, i32) {
    %c0_i32 = arith.constant 0 : i32
    %c0_i32_0 = arith.constant 0 : i32
    return %arg0, %c0_i32 : i32, i32
  }
  func.func @transform_1(%arg0: i32) -> (i32, i32) {
    %c0_i32 = arith.constant 0 : i32
    %c0_i32_0 = arith.constant 0 : i32
    %c0_i32_1 = arith.constant 0 : i32
    return %c0_i32, %c0_i32_0 : i32, i32
  }
  func.func @transform_2(%arg0: i32) -> (i32, i32) {
    %c0_i32 = arith.constant 0 : i32
    %c0_i32_0 = arith.constant 0 : i32
    %c0_i32_1 = arith.constant 0 : i32
    return %c0_i32, %c0_i32_0 : i32, i32
  }
  func.func @transform_3(%arg0: i32) -> (i32, i32) {
    %c0_i32 = arith.constant 0 : i32
    %c0_i32_0 = arith.constant 0 : i32
    %c0_i32_1 = arith.constant 0 : i32
    return %c0_i32, %c0_i32_0 : i32, i32
  }
  func.func @transform_4(%arg0: i32) -> (i32, i32) {
    %c0_i32 = arith.constant 0 : i32
    %c0_i32_0 = arith.constant 0 : i32
    %c0_i32_1 = arith.constant 0 : i32
    return %c0_i32, %c0_i32_0 : i32, i32
  }
  func.func @transform_5(%arg0: i32) -> (i32, i32) {
    %c0_i32 = arith.constant 0 : i32
    %c0_i32_0 = arith.constant 0 : i32
    %c0_i32_1 = arith.constant 0 : i32
    return %c0_i32, %c0_i32_0 : i32, i32
  }
  func.func @transform_6(%arg0: i32) -> (i32, i32) {
    %c0_i32 = arith.constant 0 : i32
    %c0_i32_0 = arith.constant 0 : i32
    return %arg0, %c0_i32 : i32, i32
  }
}

</mosaic_0001>

<llo_original>
// kernel: tpu_custom_call.1
$region0: #{tpu_custom_call.1}
  #allocation0 [shape = 'u32[]', space=smem, size = 0x4, offset = 0x4, fixed_abs, tag = 'smem constant byte address 0x4 - core index']
  #allocation1 [shape = 'u32[144,128]{1,0:T(1,128)}', space=vmem, size = 0x12000, scoped, tag = 'internal scratch']
  %s0 = inlined_call_operand.hbm [shape: bf16[16,128], index: 0, kind: input, shape index: {}]
  %s1 = inlined_call_operand.hbm [shape: bf16[128,128], index: 1, kind: input, shape index: {}]
  %s2 = inlined_call_operand.hbm [shape: bf16[128,128], index: 2, kind: input, shape index: {}]
  %s3 = inlined_call_operand.hbm [shape: bf16[128,128], index: 3, kind: input, shape index: {}]
  %s4 = inlined_call_operand.hbm [shape: bf16[128,128], index: 4, kind: input, shape index: {}]
  %s5 = inlined_call_operand.vmem [shape: f32[4,128], index: 5, kind: input, shape index: {}]
  %s6 = inlined_call_operand.hbm [shape: f32[16,128], index: 6, kind: output, shape index: {}]
  %s7 = sld [smem:[#allocation0]]
  $region54: #{tpu_custom_call.1} parent=0
    _
  %s9 = ssub.s32 1, %s7
  %s10 = scalar_select 0, %s9, %s7
  $region1: #{tpu_custom_call.1} parent=0
    #allocation2 [shape = 'u8[4096]{0}', space=vmem, size = 0x1000, scoped, tag = 'input window, operand 0, single buffered']
    #allocation3 [shape = 's32[1]{0}', space=sflag, size = 0x4, scoped, tag = 'scoped memory for tpu_custom_call.1']
    #allocation4 [shape = 's32[1]{0}', space=sflag, size = 0x4, scoped, tag = 'scoped memory for tpu_custom_call.1']
    #allocation5 [shape = 'u8[32768]{0}', space=vmem, size = 0x8000, scoped, tag = 'input window, operand 1, single buffered']
    #allocation6 [shape = 's32[1]{0}', space=sflag, size = 0x4, scoped, tag = 'scoped memory for tpu_custom_call.1']
    #allocation7 [shape = 'u8[32768]{0}', space=vmem, size = 0x8000, scoped, tag = 'input window, operand 2, single buffered']
    #allocation8 [shape = 'u8[32768]{0}', space=vmem, size = 0x8000, scoped, tag = 'input window, operand 3, single buffered']
    #allocation9 [shape = 's32[1]{0}', space=sflag, size = 0x4, scoped, tag = 'scoped memory for tpu_custom_call.1']
    #allocation10 [shape = 'u8[32768]{0}', space=vmem, size = 0x8000, scoped, tag = 'input window, operand 4, single buffered']
    #allocation11 [shape = 'u8[8192]{0}', space=vmem, size = 0x2000, scoped, tag = 'output window, operand 0, single buffered']
    %11 = vsyncpa [#allocation3], 0
    %12 = vsyncpa [#allocation6], 0
    %13 = vsyncpa [#allocation9], 0
    %14 = vsyncpa [#allocation4], 0
    // Predicated region
    $region2: #{tpu_custom_call.1} parent=1 // pred_check
      _
    $region3: #{tpu_custom_call.1} parent=1 // pred_check_branch
      %16 = sbr.rel (0) target = $region5
    $region4: #{tpu_custom_call.1} parent=1 // pred_region
      %s18 = ssub.s32 128, 128
      %19 = vsyncadd [#allocation3], %s18
      %s20 = sshll.u32 [#allocation2], 4
      %s21 = int_to_ptr.vmem [resolvable:$true] %s20
      %26 = dma.hbm_to_vmem [thread:$0]  %s0, 128, %s21, [#allocation3], 64, 64, 4
    $region5: #{tpu_custom_call.1} parent=1 // pred_fallthru
      _
    // Predicated region
    $region6: #{tpu_custom_call.1} parent=1 // pred_check
      _
    $region7: #{tpu_custom_call.1} parent=1 // pred_check_branch
      %28 = sbr.rel (0) target = $region9
    $region8: #{tpu_custom_call.1} parent=1 // pred_region
      %s30 = ssub.s32 1024, 1024
      %31 = vsyncadd [#allocation6], %s30
      %s32 = sshll.u32 [#allocation5], 4
      %s33 = int_to_ptr.vmem [resolvable:$true] %s32
      %38 = dma.hbm_to_vmem [thread:$0]  %s1, 1024, %s33, [#allocation6], 64, 64, 4
    $region9: #{tpu_custom_call.1} parent=1 // pred_fallthru
      _
    // Predicated region
    $region10: #{tpu_custom_call.1} parent=1 // pred_check
      _
    $region11: #{tpu_custom_call.1} parent=1 // pred_check_branch
      %40 = sbr.rel (0) target = $region13
    $region12: #{tpu_custom_call.1} parent=1 // pred_region
      %s42 = ssub.s32 1024, 1024
      %43 = vsyncadd [#allocation6], %s42
      %s44 = sshll.u32 [#allocation7], 4
      %s45 = int_to_ptr.vmem [resolvable:$true] %s44
      %50 = dma.hbm_to_vmem [thread:$0]  %s2, 1024, %s45, [#allocation6], 64, 64, 4
    $region13: #{tpu_custom_call.1} parent=1 // pred_fallthru
      _
    // Predicated region
    $region14: #{tpu_custom_call.1} parent=1 // pred_check
      _
    $region15: #{tpu_custom_call.1} parent=1 // pred_check_branch
      %52 = sbr.rel (0) target = $region17
    $region16: #{tpu_custom_call.1} parent=1 // pred_region
      %s54 = ssub.s32 1024, 1024
      %55 = vsyncadd [#allocation9], %s54
      %s56 = sshll.u32 [#allocation8], 4
      %s57 = int_to_ptr.vmem [resolvable:$true] %s56
      %62 = dma.hbm_to_vmem [thread:$0]  %s3, 1024, %s57, [#allocation9], 64, 64, 4
    $region17: #{tpu_custom_call.1} parent=1 // pred_fallthru
      _
    // Predicated region
    $region18: #{tpu_custom_call.1} parent=1 // pred_check
      _
    $region19: #{tpu_custom_call.1} parent=1 // pred_check_branch
      %64 = sbr.rel (0) target = $region21
    $region20: #{tpu_custom_call.1} parent=1 // pred_region
      %s66 = ssub.s32 1024, 1024
      %67 = vsyncadd [#allocation9], %s66
      %s68 = sshll.u32 [#allocation10], 4
      %s69 = int_to_ptr.vmem [resolvable:$true] %s68
      %74 = dma.hbm_to_vmem [thread:$0]  %s4, 1024, %s69, [#allocation9], 64, 64, 4
    $region21: #{tpu_custom_call.1} parent=1 // pred_fallthru
      _
    // Predicated region
    $region22: #{tpu_custom_call.1} parent=1 // pred_check
      _
    $region23: #{tpu_custom_call.1} parent=1 // pred_check_branch
      %76 = sbr.rel (0) target = $region25
    $region24: #{tpu_custom_call.1} parent=1 // pred_region
      _
    $region25: #{tpu_custom_call.1} parent=1 // pred_fallthru
      _
    // Predicated region
    $region26: #{tpu_custom_call.1} parent=1 // pred_check
      _
    $region27: #{tpu_custom_call.1} parent=1 // pred_check_branch
      %78 = sbr.rel (0) target = $region29
    $region28: #{tpu_custom_call.1} parent=1 // pred_region
      %79 = dma.done [#allocation3], 128
    $region29: #{tpu_custom_call.1} parent=1 // pred_fallthru
      _
    // Predicated region
    $region30: #{tpu_custom_call.1} parent=1 // pred_check
      _
    $region31: #{tpu_custom_call.1} parent=1 // pred_check_branch
      %81 = sbr.rel (0) target = $region33
    $region32: #{tpu_custom_call.1} parent=1 // pred_region
      %82 = dma.done [#allocation6], 1024
    $region33: #{tpu_custom_call.1} parent=1 // pred_fallthru
      _
    // Predicated region
    $region34: #{tpu_custom_call.1} parent=1 // pred_check
      _
    $region35: #{tpu_custom_call.1} parent=1 // pred_check_branch
      %84 = sbr.rel (0) target = $region37
    $region36: #{tpu_custom_call.1} parent=1 // pred_region
      %85 = dma.done [#allocation6], 1024
    $region37: #{tpu_custom_call.1} parent=1 // pred_fallthru
      _
    // Predicated region
    $region38: #{tpu_custom_call.1} parent=1 // pred_check
      _
    $region39: #{tpu_custom_call.1} parent=1 // pred_check_branch
      %87 = sbr.rel (0) target = $region41
    $region40: #{tpu_custom_call.1} parent=1 // pred_region
      %88 = dma.done [#allocation9], 1024
    $region41: #{tpu_custom_call.1} parent=1 // pred_fallthru
      _
    // Predicated region
    $region42: #{tpu_custom_call.1} parent=1 // pred_check
      _
    $region43: #{tpu_custom_call.1} parent=1 // pred_check_branch
      %90 = sbr.rel (0) target = $region45
    $region44: #{tpu_custom_call.1} parent=1 // pred_region
      %91 = dma.done [#allocation9], 1024
    $region45: #{tpu_custom_call.1} parent=1 // pred_fallthru
      _
    %v93 = vld [vmem:[#allocation2] sm:$0xf]
    %v94 = vld [vmem:[#allocation2 + $0x4] sm:$0xf]
    %v95 = vld [vmem:[#allocation5] sm:$0xf]
    %v96 = vld [vmem:[#allocation5 + $0x4] sm:$0xf]
    %v97 = vld [vmem:[#allocation5 + $0x8] sm:$0xf]
    %v98 = vld [vmem:[#allocation5 + $0xc] sm:$0xf]
    %v99 = vld [vmem:[#allocation5 + $0x10] sm:$0xf]
    %v100 = vld [vmem:[#allocation5 + $0x14] sm:$0xf]
    %v101 = vld [vmem:[#allocation5 + $0x18] sm:$0xf]
    %v102 = vld [vmem:[#allocation5 + $0x1c] sm:$0xf]
    %v103 = vld [vmem:[#allocation5 + $0x20] sm:$0xf]
    %v104 = vld [vmem:[#allocation5 + $0x24] sm:$0xf]
    %v105 = vld [vmem:[#allocation5 + $0x28] sm:$0xf]
    %v106 = vld [vmem:[#allocation5 + $0x2c] sm:$0xf]
    %v107 = vld [vmem:[#allocation5 + $0x30] sm:$0xf]
    %v108 = vld [vmem:[#allocation5 + $0x34] sm:$0xf]
    %v109 = vld [vmem:[#allocation5 + $0x38] sm:$0xf]
    %v110 = vld [vmem:[#allocation5 + $0x3c] sm:$0xf]
    %v111 = vld [vmem:[%s5] sm:$0x1]
    %v112 = vlaneseq
    %v113 = vshrl.u32 %v112, 7
    %v114 = vsub.s32 0, %v113
    %v115 = vrot.slane %v111, %v114
    %v118 = vunpack.c.l.b16 %v93
    %v119 = vunpack.c.l.b16 %v94
    %v120 = vpack.c.b16 %v119, %v118
    %v138 = vunpack.c.l.b16 %v95
    %v139 = vunpack.c.l.b16 %v96
    %v140 = vunpack.c.l.b16 %v97
    %v141 = vunpack.c.l.b16 %v98
    %v142 = vunpack.c.l.b16 %v99
    %v143 = vunpack.c.l.b16 %v100
    %v144 = vunpack.c.l.b16 %v101
    %v145 = vunpack.c.l.b16 %v102
    %v146 = vunpack.c.l.b16 %v103
    %v147 = vunpack.c.l.b16 %v104
    %v148 = vunpack.c.l.b16 %v105
    %v149 = vunpack.c.l.b16 %v106
    %v150 = vunpack.c.l.b16 %v107
    %v151 = vunpack.c.l.b16 %v108
    %v152 = vunpack.c.l.b16 %v109
    %v153 = vunpack.c.l.b16 %v110
    %v154 = vpack.c.b16 %v139, %v138
    %v155 = vpack.c.b16 %v141, %v140
    %v156 = vpack.c.b16 %v143, %v142
    %v157 = vpack.c.b16 %v145, %v144
    %v158 = vpack.c.b16 %v147, %v146
    %v159 = vpack.c.b16 %v149, %v148
    %v160 = vpack.c.b16 %v151, %v150
    %v161 = vpack.c.b16 %v153, %v152
    %170 = vmatprep.subr.bf16.mxu0 0
    %171 = vmatpush1.bf16.msra.mxu0 %v161
    %172 = vmatprep.subr.bf16.mxu0 0
    %173 = vmatpush1.bf16.msra.mxu0 %v160
    %174 = vmatprep.subr.bf16.mxu0 0
    %175 = vmatpush1.bf16.msra.mxu0 %v159
    %176 = vmatprep.subr.bf16.mxu0 0
    %177 = vmatpush1.bf16.msra.mxu0 %v158
    %178 = vmatprep.subr.bf16.mxu0 0
    %179 = vmatpush1.bf16.msra.mxu0 %v157
    %180 = vmatprep.subr.bf16.mxu0 0
    %181 = vmatpush1.bf16.msra.mxu0 %v156
    %182 = vmatprep.subr.bf16.mxu0 0
    %183 = vmatpush1.bf16.msra.mxu0 %v155
    %184 = vmatprep.subr.bf16.mxu0 0
    %185 = vmatpush1.bf16.msra.mxu0 %v154
    %186 = vmatprep.subr.bf16.mxu0 0
    %187 = vmatpush2.bf16.msra.mxu0 0
    %188 = vmatprep.subr.bf16.mxu0 0
    %189 = vmatpush2.bf16.msra.mxu0 0
    %190 = vmatprep.subr.bf16.mxu0 0
    %191 = vmatpush2.bf16.msra.mxu0 0
    %192 = vmatprep.subr.bf16.mxu0 0
    %193 = vmatpush2.bf16.msra.mxu0 0
    %194 = vmatprep.subr.bf16.mxu0 0
    %195 = vmatpush2.bf16.msra.mxu0 0
    %196 = vmatprep.subr.bf16.mxu0 0
    %197 = vmatpush2.bf16.msra.mxu0 0
    %198 = vmatprep.subr.bf16.mxu0 0
    %199 = vmatpush2.bf16.msra.mxu0 0
    %200 = vmatprep.subr.bf16.mxu0 0
    %201 = vmatpush2.bf16.msra.mxu0 0
    %202 = vmatprep.mubr.bf16.mxu0 0
    %203 = vmatmul.mubr.bf16.gmra.mxu0 %v120
    %v204 = vpop.f32.mrf.mxu0
    %v205 = vadd.f32 %v115, %v204
    %v206 = vpop.f32.mrf.mxu0
    %v207 = vpop.f32.mrf.mxu0
    %v208 = vadd.f32 %v115, %v207
    %v209 = vpop.f32.mrf.mxu0
    %210 = vdwg.mxu0
    %vm211 = vcmp.ge.f32.partialorder %v205, 0.0
    %vm212 = vcmp.ge.f32.partialorder %v208, 0.0
    %v213 = vmul.f32 %v205, 0.01
    %v214 = vmul.f32 %v208, 0.01
    %v215 = vsel %vm211, %v205, %v213
    %v216 = vsel %vm212, %v208, %v214
    %v217 = vpack.c.bf16 %v216, %v215
    %v218 = vld [vmem:[#allocation7] sm:$0xf]
    %v219 = vld [vmem:[#allocation7 + $0x4] sm:$0xf]
    %v220 = vld [vmem:[#allocation7 + $0x8] sm:$0xf]
    %v221 = vld [vmem:[#allocation7 + $0xc] sm:$0xf]
    %v222 = vld [vmem:[#allocation7 + $0x10] sm:$0xf]
    %v223 = vld [vmem:[#allocation7 + $0x14] sm:$0xf]
    %v224 = vld [vmem:[#allocation7 + $0x18] sm:$0xf]
    %v225 = vld [vmem:[#allocation7 + $0x1c] sm:$0xf]
    %v226 = vld [vmem:[#allocation7 + $0x20] sm:$0xf]
    %v227 = vld [vmem:[#allocation7 + $0x24] sm:$0xf]
    %v228 = vld [vmem:[#allocation7 + $0x28] sm:$0xf]
    %v229 = vld [vmem:[#allocation7 + $0x2c] sm:$0xf]
    %v230 = vld [vmem:[#allocation7 + $0x30] sm:$0xf]
    %v231 = vld [vmem:[#allocation7 + $0x34] sm:$0xf]
    %v232 = vld [vmem:[#allocation7 + $0x38] sm:$0xf]
    %v233 = vld [vmem:[#allocation7 + $0x3c] sm:$0xf]
    %v234 = vld [vmem:[%s5 + $0x1] sm:$0x1]
    %v235 = vlaneseq
    %v236 = vshrl.u32 %v235, 7
    %v237 = vsub.s32 0, %v236
    %v238 = vrot.slane %v234, %v237
    %v255 = vunpack.c.l.b16 %v218
    %v256 = vunpack.c.l.b16 %v219
    %v257 = vunpack.c.l.b16 %v220
    %v258 = vunpack.c.l.b16 %v221
    %v259 = vunpack.c.l.b16 %v222
    %v260 = vunpack.c.l.b16 %v223
    %v261 = vunpack.c.l.b16 %v224
    %v262 = vunpack.c.l.b16 %v225
    %v263 = vunpack.c.l.b16 %v226
    %v264 = vunpack.c.l.b16 %v227
    %v265 = vunpack.c.l.b16 %v228
    %v266 = vunpack.c.l.b16 %v229
    %v267 = vunpack.c.l.b16 %v230
    %v268 = vunpack.c.l.b16 %v231
    %v269 = vunpack.c.l.b16 %v232
    %v270 = vunpack.c.l.b16 %v233
    %v271 = vpack.c.b16 %v256, %v255
    %v272 = vpack.c.b16 %v258, %v257
    %v273 = vpack.c.b16 %v260, %v259
    %v274 = vpack.c.b16 %v262, %v261
    %v275 = vpack.c.b16 %v264, %v263
    %v276 = vpack.c.b16 %v266, %v265
    %v277 = vpack.c.b16 %v268, %v267
    %v278 = vpack.c.b16 %v270, %v269
    %287 = vmatprep.subr.bf16.mxu0 0
    %288 = vmatpush1.bf16.msra.mxu0 %v278
    %289 = vmatprep.subr.bf16.mxu0 0
    %290 = vmatpush1.bf16.msra.mxu0 %v277
    %291 = vmatprep.subr.bf16.mxu0 0
    %292 = vmatpush1.bf16.msra.mxu0 %v276
    %293 = vmatprep.subr.bf16.mxu0 0
    %294 = vmatpush1.bf16.msra.mxu0 %v275
    %295 = vmatprep.subr.bf16.mxu0 0
    %296 = vmatpush1.bf16.msra.mxu0 %v274
    %297 = vmatprep.subr.bf16.mxu0 0
    %298 = vmatpush1.bf16.msra.mxu0 %v273
    %299 = vmatprep.subr.bf16.mxu0 0
    %300 = vmatpush1.bf16.msra.mxu0 %v272
    %301 = vmatprep.subr.bf16.mxu0 0
    %302 = vmatpush1.bf16.msra.mxu0 %v271
    %303 = vmatprep.subr.bf16.mxu0 0
    %304 = vmatpush2.bf16.msra.mxu0 0
    %305 = vmatprep.subr.bf16.mxu0 0
    %306 = vmatpush2.bf16.msra.mxu0 0
    %307 = vmatprep.subr.bf16.mxu0 0
    %308 = vmatpush2.bf16.msra.mxu0 0
    %309 = vmatprep.subr.bf16.mxu0 0
    %310 = vmatpush2.bf16.msra.mxu0 0
    %311 = vmatprep.subr.bf16.mxu0 0
    %312 = vmatpush2.bf16.msra.mxu0 0
    %313 = vmatprep.subr.bf16.mxu0 0
    %314 = vmatpush2.bf16.msra.mxu0 0
    %315 = vmatprep.subr.bf16.mxu0 0
    %316 = vmatpush2.bf16.msra.mxu0 0
    %317 = vmatprep.subr.bf16.mxu0 0
    %318 = vmatpush2.bf16.msra.mxu0 0
    %319 = vmatprep.mubr.bf16.mxu0 0
    %320 = vmatmul.mubr.bf16.gmra.mxu0 %v217
    %v321 = vpop.f32.mrf.mxu0
    %v322 = vadd.f32 %v238, %v321
    %v323 = vpop.f32.mrf.mxu0
    %v324 = vpop.f32.mrf.mxu0
    %v325 = vadd.f32 %v238, %v324
    %v326 = vpop.f32.mrf.mxu0
    %327 = vdwg.mxu0
    %vm328 = vcmp.ge.f32.partialorder %v322, 0.0
    %vm329 = vcmp.ge.f32.partialorder %v325, 0.0
    %v330 = vmul.f32 %v322, 0.01
    %v331 = vmul.f32 %v325, 0.01
    %v332 = vsel %vm328, %v322, %v330
    %v333 = vsel %vm329, %v325, %v331
    %v334 = vpack.c.bf16 %v333, %v332
    %v335 = vld [vmem:[#allocation8] sm:$0xf]
    %v336 = vld [vmem:[#allocation8 + $0x4] sm:$0xf]
    %v337 = vld [vmem:[#allocation8 + $0x8] sm:$0xf]
    %v338 = vld [vmem:[#allocation8 + $0xc] sm:$0xf]
    %v339 = vld [vmem:[#allocation8 + $0x10] sm:$0xf]
    %v340 = vld [vmem:[#allocation8 + $0x14] sm:$0xf]
    %v341 = vld [vmem:[#allocation8 + $0x18] sm:$0xf]
    %v342 = vld [vmem:[#allocation8 + $0x1c] sm:$0xf]
    %v343 = vld [vmem:[#allocation8 + $0x20] sm:$0xf]
    %v344 = vld [vmem:[#allocation8 + $0x24] sm:$0xf]
    %v345 = vld [vmem:[#allocation8 + $0x28] sm:$0xf]
    %v346 = vld [vmem:[#allocation8 + $0x2c] sm:$0xf]
    %v347 = vld [vmem:[#allocation8 + $0x30] sm:$0xf]
    %v348 = vld [vmem:[#allocation8 + $0x34] sm:$0xf]
    %v349 = vld [vmem:[#allocation8 + $0x38] sm:$0xf]
    %v350 = vld [vmem:[#allocation8 + $0x3c] sm:$0xf]
    %v351 = vld [vmem:[%s5 + $0x2] sm:$0x1]
    %v352 = vlaneseq
    %v353 = vshrl.u32 %v352, 7
    %v354 = vsub.s32 0, %v353
    %v355 = vrot.slane %v351, %v354
    %v372 = vunpack.c.l.b16 %v335
    %v373 = vunpack.c.l.b16 %v336
    %v374 = vunpack.c.l.b16 %v337
    %v375 = vunpack.c.l.b16 %v338
    %v376 = vunpack.c.l.b16 %v339
    %v377 = vunpack.c.l.b16 %v340
    %v378 = vunpack.c.l.b16 %v341
    %v379 = vunpack.c.l.b16 %v342
    %v380 = vunpack.c.l.b16 %v343
    %v381 = vunpack.c.l.b16 %v344
    %v382 = vunpack.c.l.b16 %v345
    %v383 = vunpack.c.l.b16 %v346
    %v384 = vunpack.c.l.b16 %v347
    %v385 = vunpack.c.l.b16 %v348
    %v386 = vunpack.c.l.b16 %v349
    %v387 = vunpack.c.l.b16 %v350
    %v388 = vpack.c.b16 %v373, %v372
    %v389 = vpack.c.b16 %v375, %v374
    %v390 = vpack.c.b16 %v377, %v376
    %v391 = vpack.c.b16 %v379, %v378
    %v392 = vpack.c.b16 %v381, %v380
    %v393 = vpack.c.b16 %v383, %v382
    %v394 = vpack.c.b16 %v385, %v384
    %v395 = vpack.c.b16 %v387, %v386
    %404 = vmatprep.subr.bf16.mxu0 0
    %405 = vmatpush1.bf16.msra.mxu0 %v395
    %406 = vmatprep.subr.bf16.mxu0 0
    %407 = vmatpush1.bf16.msra.mxu0 %v394
    %408 = vmatprep.subr.bf16.mxu0 0
    %409 = vmatpush1.bf16.msra.mxu0 %v393
    %410 = vmatprep.subr.bf16.mxu0 0
    %411 = vmatpush1.bf16.msra.mxu0 %v392
    %412 = vmatprep.subr.bf16.mxu0 0
    %413 = vmatpush1.bf16.msra.mxu0 %v391
    %414 = vmatprep.subr.bf16.mxu0 0
    %415 = vmatpush1.bf16.msra.mxu0 %v390
    %416 = vmatprep.subr.bf16.mxu0 0
    %417 = vmatpush1.bf16.msra.mxu0 %v389
    %418 = vmatprep.subr.bf16.mxu0 0
    %419 = vmatpush1.bf16.msra.mxu0 %v388
    %420 = vmatprep.subr.bf16.mxu0 0
    %421 = vmatpush2.bf16.msra.mxu0 0
    %422 = vmatprep.subr.bf16.mxu0 0
    %423 = vmatpush2.bf16.msra.mxu0 0
    %424 = vmatprep.subr.bf16.mxu0 0
    %425 = vmatpush2.bf16.msra.mxu0 0
    %426 = vmatprep.subr.bf16.mxu0 0
    %427 = vmatpush2.bf16.msra.mxu0 0
    %428 = vmatprep.subr.bf16.mxu0 0
    %429 = vmatpush2.bf16.msra.mxu0 0
    %430 = vmatprep.subr.bf16.mxu0 0
    %431 = vmatpush2.bf16.msra.mxu0 0
    %432 = vmatprep.subr.bf16.mxu0 0
    %433 = vmatpush2.bf16.msra.mxu0 0
    %434 = vmatprep.subr.bf16.mxu0 0
    %435 = vmatpush2.bf16.msra.mxu0 0
    %436 = vmatprep.mubr.bf16.mxu0 0
    %437 = vmatmul.mubr.bf16.gmra.mxu0 %v334
    %v438 = vpop.f32.mrf.mxu0
    %v439 = vadd.f32 %v355, %v438
    %v440 = vpop.f32.mrf.mxu0
    %v441 = vpop.f32.mrf.mxu0
    %v442 = vadd.f32 %v355, %v441
    %v443 = vpop.f32.mrf.mxu0
    %444 = vdwg.mxu0
    %vm445 = vcmp.ge.f32.partialorder %v439, 0.0
    %vm446 = vcmp.ge.f32.partialorder %v442, 0.0
    %v447 = vmul.f32 %v439, 0.01
    %v448 = vmul.f32 %v442, 0.01
    %v449 = vsel %vm445, %v439, %v447
    %v450 = vsel %vm446, %v442, %v448
    %v451 = vpack.c.bf16 %v450, %v449
    %v452 = vld [vmem:[#allocation10] sm:$0xf]
    %v453 = vld [vmem:[#allocation10 + $0x4] sm:$0xf]
    %v454 = vld [vmem:[#allocation10 + $0x8] sm:$0xf]
    %v455 = vld [vmem:[#allocation10 + $0xc] sm:$0xf]
    %v456 = vld [vmem:[#allocation10 + $0x10] sm:$0xf]
    %v457 = vld [vmem:[#allocation10 + $0x14] sm:$0xf]
    %v458 = vld [vmem:[#allocation10 + $0x18] sm:$0xf]
    %v459 = vld [vmem:[#allocation10 + $0x1c] sm:$0xf]
    %v460 = vld [vmem:[#allocation10 + $0x20] sm:$0xf]
    %v461 = vld [vmem:[#allocation10 + $0x24] sm:$0xf]
    %v462 = vld [vmem:[#allocation10 + $0x28] sm:$0xf]
    %v463 = vld [vmem:[#allocation10 + $0x2c] sm:$0xf]
    %v464 = vld [vmem:[#allocation10 + $0x30] sm:$0xf]
    %v465 = vld [vmem:[#allocation10 + $0x34] sm:$0xf]
    %v466 = vld [vmem:[#allocation10 + $0x38] sm:$0xf]
    %v467 = vld [vmem:[#allocation10 + $0x3c] sm:$0xf]
    %v468 = vld [vmem:[%s5 + $0x3] sm:$0x1]
    %v469 = vlaneseq
    %v470 = vshrl.u32 %v469, 7
    %v471 = vsub.s32 0, %v470
    %v472 = vrot.slane %v468, %v471
    %v489 = vunpack.c.l.b16 %v452
    %v490 = vunpack.c.l.b16 %v453
    %v491 = vunpack.c.l.b16 %v454
    %v492 = vunpack.c.l.b16 %v455
    %v493 = vunpack.c.l.b16 %v456
    %v494 = vunpack.c.l.b16 %v457
    %v495 = vunpack.c.l.b16 %v458
    %v496 = vunpack.c.l.b16 %v459
    %v497 = vunpack.c.l.b16 %v460
    %v498 = vunpack.c.l.b16 %v461
    %v499 = vunpack.c.l.b16 %v462
    %v500 = vunpack.c.l.b16 %v463
    %v501 = vunpack.c.l.b16 %v464
    %v502 = vunpack.c.l.b16 %v465
    %v503 = vunpack.c.l.b16 %v466
    %v504 = vunpack.c.l.b16 %v467
    %v505 = vpack.c.b16 %v490, %v489
    %v506 = vpack.c.b16 %v492, %v491
    %v507 = vpack.c.b16 %v494, %v493
    %v508 = vpack.c.b16 %v496, %v495
    %v509 = vpack.c.b16 %v498, %v497
    %v510 = vpack.c.b16 %v500, %v499
    %v511 = vpack.c.b16 %v502, %v501
    %v512 = vpack.c.b16 %v504, %v503
    %521 = vmatprep.subr.bf16.mxu0 0
    %522 = vmatpush1.bf16.msra.mxu0 %v512
    %523 = vmatprep.subr.bf16.mxu0 0
    %524 = vmatpush1.bf16.msra.mxu0 %v511
    %525 = vmatprep.subr.bf16.mxu0 0
    %526 = vmatpush1.bf16.msra.mxu0 %v510
    %527 = vmatprep.subr.bf16.mxu0 0
    %528 = vmatpush1.bf16.msra.mxu0 %v509
    %529 = vmatprep.subr.bf16.mxu0 0
    %530 = vmatpush1.bf16.msra.mxu0 %v508
    %531 = vmatprep.subr.bf16.mxu0 0
    %532 = vmatpush1.bf16.msra.mxu0 %v507
    %533 = vmatprep.subr.bf16.mxu0 0
    %534 = vmatpush1.bf16.msra.mxu0 %v506
    %535 = vmatprep.subr.bf16.mxu0 0
    %536 = vmatpush1.bf16.msra.mxu0 %v505
    %537 = vmatprep.subr.bf16.mxu0 0
    %538 = vmatpush2.bf16.msra.mxu0 0
    %539 = vmatprep.subr.bf16.mxu0 0
    %540 = vmatpush2.bf16.msra.mxu0 0
    %541 = vmatprep.subr.bf16.mxu0 0
    %542 = vmatpush2.bf16.msra.mxu0 0
    %543 = vmatprep.subr.bf16.mxu0 0
    %544 = vmatpush2.bf16.msra.mxu0 0
    %545 = vmatprep.subr.bf16.mxu0 0
    %546 = vmatpush2.bf16.msra.mxu0 0
    %547 = vmatprep.subr.bf16.mxu0 0
    %548 = vmatpush2.bf16.msra.mxu0 0
    %549 = vmatprep.subr.bf16.mxu0 0
    %550 = vmatpush2.bf16.msra.mxu0 0
    %551 = vmatprep.subr.bf16.mxu0 0
    %552 = vmatpush2.bf16.msra.mxu0 0
    %553 = vmatprep.mubr.bf16.mxu0 0
    %554 = vmatmul.mubr.bf16.gmra.mxu0 %v451
    %v555 = vpop.f32.mrf.mxu0
    %v556 = vadd.f32 %v472, %v555
    %v557 = vpop.f32.mrf.mxu0
    %v558 = vpop.f32.mrf.mxu0
    %v559 = vadd.f32 %v472, %v558
    %v560 = vpop.f32.mrf.mxu0
    %561 = vdwg.mxu0
    %562 = vst [vmem:[#allocation11] sm:$0xff] %v556
    %563 = vst [vmem:[#allocation11 + $0x8] sm:$0xff] %v559
    // Predicated region
    $region46: #{tpu_custom_call.1} parent=1 // pred_check
      _
    $region47: #{tpu_custom_call.1} parent=1 // pred_check_branch
      %565 = sbr.rel (0) target = $region49
    $region48: #{tpu_custom_call.1} parent=1 // pred_region
      %s567 = ssub.s32 256, 256
      %568 = vsyncadd [#allocation4], %s567
      %s569 = sshll.u32 [#allocation11], 4
      %s570 = int_to_ptr.vmem [resolvable:$true] %s569
      %575 = dma.vmem_to_hbm [thread:$0]  %s570, 256, %s6, [#allocation4], 128, 128, 8
    $region49: #{tpu_custom_call.1} parent=1 // pred_fallthru
      _
    // Predicated region
    $region50: #{tpu_custom_call.1} parent=1 // pred_check
      _
    $region51: #{tpu_custom_call.1} parent=1 // pred_check_branch
      %577 = sbr.rel (0) target = $region53
    $region52: #{tpu_custom_call.1} parent=1 // pred_region
      %578 = dma.done [#allocation4], 256
    $region53: #{tpu_custom_call.1} parent=1 // pred_fallthru
      _
    %579 = vsyncpa [#allocation3], 1
    %580 = vsyncpa [#allocation6], 1
    %581 = vsyncpa [#allocation9], 1
    %582 = vsyncpa [#allocation4], 1

// kernel: tpu_custom_call.1
$region0: #{tpu_custom_call.1}
  #allocation0 [shape = 'u32[]', space=smem, size = 0x4, offset = 0x4, fixed_abs, tag = 'smem constant byte address 0x4 - core index']
  #allocation1 [shape = 'u32[144,128]{1,0:T(1,128)}', space=vmem, size = 0x12000, scoped, tag = 'internal scratch']
  %s0 = inlined_call_operand.hbm [shape: bf16[16,128], index: 0, kind: input, shape index: {}]
  %s1 = inlined_call_operand.hbm [shape: bf16[128,128], index: 1, kind: input, shape index: {}]
  %s2 = inlined_call_operand.hbm [shape: bf16[128,128], index: 2, kind: input, shape index: {}]
  %s3 = inlined_call_operand.hbm [shape: bf16[128,128], index: 3, kind: input, shape index: {}]
  %s4 = inlined_call_operand.hbm [shape: bf16[128,128], index: 4, kind: input, shape index: {}]
  %s5 = inlined_call_operand.vmem [shape: f32[4,128], index: 5, kind: input, shape index: {}]
  %s6 = inlined_call_operand.hbm [shape: f32[16,128], index: 6, kind: output, shape index: {}]
  %s7 = sld [smem:[#allocation0]]
  $region54: #{tpu_custom_call.1} parent=0
    _
  %s9 = ssub.s32 1, %s7
  %s10 = scalar_select 0, %s9, %s7
  $region1: #{tpu_custom_call.1} parent=0
    #allocation2 [shape = 'u8[4096]{0}', space=vmem, size = 0x1000, scoped, tag = 'input window, operand 0, single buffered']
    #allocation3 [shape = 's32[1]{0}', space=sflag, size = 0x4, scoped, tag = 'scoped memory for tpu_custom_call.1']
    #allocation4 [shape = 's32[1]{0}', space=sflag, size = 0x4, scoped, tag = 'scoped memory for tpu_custom_call.1']
    #allocation5 [shape = 'u8[32768]{0}', space=vmem, size = 0x8000, scoped, tag = 'input window, operand 1, single buffered']
    #allocation6 [shape = 's32[1]{0}', space=sflag, size = 0x4, scoped, tag = 'scoped memory for tpu_custom_call.1']
    #allocation7 [shape = 'u8[32768]{0}', space=vmem, size = 0x8000, scoped, tag = 'input window, operand 2, single buffered']
    #allocation8 [shape = 'u8[32768]{0}', space=vmem, size = 0x8000, scoped, tag = 'input window, operand 3, single buffered']
    #allocation9 [shape = 's32[1]{0}', space=sflag, size = 0x4, scoped, tag = 'scoped memory for tpu_custom_call.1']
    #allocation10 [shape = 'u8[32768]{0}', space=vmem, size = 0x8000, scoped, tag = 'input window, operand 4, single buffered']
    #allocation11 [shape = 'u8[8192]{0}', space=vmem, size = 0x2000, scoped, tag = 'output window, operand 0, single buffered']
    %11 = vsyncpa [#allocation3], 0
    %12 = vsyncpa [#allocation6], 0
    %13 = vsyncpa [#allocation9], 0
    %14 = vsyncpa [#allocation4], 0
    // Predicated region
    $region2: #{tpu_custom_call.1} parent=1 // pred_check
      _
    $region3: #{tpu_custom_call.1} parent=1 // pred_check_branch
      %16 = sbr.rel (0) target = $region5
    $region4: #{tpu_custom_call.1} parent=1 // pred_region
      %s18 = ssub.s32 128, 128
      %19 = vsyncadd [#allocation3], %s18
      %s20 = sshll.u32 [#allocation2], 4
      %s21 = int_to_ptr.vmem [resolvable:$true] %s20
      %26 = dma.hbm_to_vmem [thread:$0]  %s0, 128, %s21, [#allocation3], 64, 64, 4
    $region5: #{tpu_custom_call.1} parent=1 // pred_fallthru
      _
    // Predicated region
    $region6: #{tpu_custom_call.1} parent=1 // pred_check
      _
    $region7: #{tpu_custom_call.1} parent=1 // pred_check_branch
      %28 = sbr.rel (0) target = $region9
    $region8: #{tpu_custom_call.1} parent=1 // pred_region
      %s30 = ssub.s32 1024, 1024
      %31 = vsyncadd [#allocation6], %s30
      %s32 = sshll.u32 [#allocation5], 4
      %s33 = int_to_ptr.vmem [resolvable:$true] %s32
      %38 = dma.hbm_to_vmem [thread:$0]  %s1, 1024, %s33, [#allocation6], 64, 64, 4
    $region9: #{tpu_custom_call.1} parent=1 // pred_fallthru
      _
    // Predicated region
    $region10: #{tpu_custom_call.1} parent=1 // pred_check
      _
    $region11: #{tpu_custom_call.1} parent=1 // pred_check_branch
      %40 = sbr.rel (0) target = $region13
    $region12: #{tpu_custom_call.1} parent=1 // pred_region
      %s42 = ssub.s32 1024, 1024
      %43 = vsyncadd [#allocation6], %s42
      %s44 = sshll.u32 [#allocation7], 4
      %s45 = int_to_ptr.vmem [resolvable:$true] %s44
      %50 = dma.hbm_to_vmem [thread:$0]  %s2, 1024, %s45, [#allocation6], 64, 64, 4
    $region13: #{tpu_custom_call.1} parent=1 // pred_fallthru
      _
    // Predicated region
    $region14: #{tpu_custom_call.1} parent=1 // pred_check
      _
    $region15: #{tpu_custom_call.1} parent=1 // pred_check_branch
      %52 = sbr.rel (0) target = $region17
    $region16: #{tpu_custom_call.1} parent=1 // pred_region
      %s54 = ssub.s32 1024, 1024
      %55 = vsyncadd [#allocation9], %s54
      %s56 = sshll.u32 [#allocation8], 4
      %s57 = int_to_ptr.vmem [resolvable:$true] %s56
      %62 = dma.hbm_to_vmem [thread:$0]  %s3, 1024, %s57, [#allocation9], 64, 64, 4
    $region17: #{tpu_custom_call.1} parent=1 // pred_fallthru
      _
    // Predicated region
    $region18: #{tpu_custom_call.1} parent=1 // pred_check
      _
    $region19: #{tpu_custom_call.1} parent=1 // pred_check_branch
      %64 = sbr.rel (0) target = $region21
    $region20: #{tpu_custom_call.1} parent=1 // pred_region
      %s66 = ssub.s32 1024, 1024
      %67 = vsyncadd [#allocation9], %s66
      %s68 = sshll.u32 [#allocation10], 4
      %s69 = int_to_ptr.vmem [resolvable:$true] %s68
      %74 = dma.hbm_to_vmem [thread:$0]  %s4, 1024, %s69, [#allocation9], 64, 64, 4
    $region21: #{tpu_custom_call.1} parent=1 // pred_fallthru
      _
    // Predicated region
    $region22: #{tpu_custom_call.1} parent=1 // pred_check
      _
    $region23: #{tpu_custom_call.1} parent=1 // pred_check_branch
      %76 = sbr.rel (0) target = $region25
    $region24: #{tpu_custom_call.1} parent=1 // pred_region
      _
    $region25: #{tpu_custom_call.1} parent=1 // pred_fallthru
      _
    // Predicated region
    $region26: #{tpu_custom_call.1} parent=1 // pred_check
      _
    $region27: #{tpu_custom_call.1} parent=1 // pred_check_branch
      %78 = sbr.rel (0) target = $region29
    $region28: #{tpu_custom_call.1} parent=1 // pred_region
      %79 = dma.done [#allocation3], 128
    $region29: #{tpu_custom_call.1} parent=1 // pred_fallthru
      _
    // Predicated region
    $region30: #{tpu_custom_call.1} parent=1 // pred_check
      _
    $region31: #{tpu_custom_call.1} parent=1 // pred_check_branch
      %81 = sbr.rel (0) target = $region33
    $region32: #{tpu_custom_call.1} parent=1 // pred_region
      %82 = dma.done [#allocation6], 1024
    $region33: #{tpu_custom_call.1} parent=1 // pred_fallthru
      _
    // Predicated region
    $region34: #{tpu_custom_call.1} parent=1 // pred_check
      _
    $region35: #{tpu_custom_call.1} parent=1 // pred_check_branch
      %84 = sbr.rel (0) target = $region37
    $region36: #{tpu_custom_call.1} parent=1 // pred_region
      %85 = dma.done [#allocation6], 1024
    $region37: #{tpu_custom_call.1} parent=1 // pred_fallthru
      _
    // Predicated region
    $region38: #{tpu_custom_call.1} parent=1 // pred_check
      _
    $region39: #{tpu_custom_call.1} parent=1 // pred_check_branch
      %87 = sbr.rel (0) target = $region41
    $region40: #{tpu_custom_call.1} parent=1 // pred_region
      %88 = dma.done [#allocation9], 1024
    $region41: #{tpu_custom_call.1} parent=1 // pred_fallthru
      _
    // Predicated region
    $region42: #{tpu_custom_call.1} parent=1 // pred_check
      _
    $region43: #{tpu_custom_call.1} parent=1 // pred_check_branch
      %90 = sbr.rel (0) target = $region45
    $region44: #{tpu_custom_call.1} parent=1 // pred_region
      %91 = dma.done [#allocation9], 1024
    $region45: #{tpu_custom_call.1} parent=1 // pred_fallthru
      _
    %v93 = vld [vmem:[#allocation2] sm:$0xf]
    %v94 = vld [vmem:[#allocation2 + $0x4] sm:$0xf]
    %v95 = vld [vmem:[#allocation5] sm:$0xf]
    %v96 = vld [vmem:[#allocation5 + $0x4] sm:$0xf]
    %v97 = vld [vmem:[#allocation5 + $0x8] sm:$0xf]
    %v98 = vld [vmem:[#allocation5 + $0xc] sm:$0xf]
    %v99 = vld [vmem:[#allocation5 + $0x10] sm:$0xf]
    %v100 = vld [vmem:[#allocation5 + $0x14] sm:$0xf]
    %v101 = vld [vmem:[#allocation5 + $0x18] sm:$0xf]
    %v102 = vld [vmem:[#allocation5 + $0x1c] sm:$0xf]
    %v103 = vld [vmem:[#allocation5 + $0x20] sm:$0xf]
    %v104 = vld [vmem:[#allocation5 + $0x24] sm:$0xf]
    %v105 = vld [vmem:[#allocation5 + $0x28] sm:$0xf]
    %v106 = vld [vmem:[#allocation5 + $0x2c] sm:$0xf]
    %v107 = vld [vmem:[#allocation5 + $0x30] sm:$0xf]
    %v108 = vld [vmem:[#allocation5 + $0x34] sm:$0xf]
    %v109 = vld [vmem:[#allocation5 + $0x38] sm:$0xf]
    %v110 = vld [vmem:[#allocation5 + $0x3c] sm:$0xf]
    %v111 = vld [vmem:[%s5] sm:$0x1]
    %v112 = vlaneseq
    %v113 = vshrl.u32 %v112, 7
    %v114 = vsub.s32 0, %v113
    %v115 = vrot.slane %v111, %v114
    %v118 = vunpack.c.l.b16 %v93
    %v119 = vunpack.c.l.b16 %v94
    %v120 = vpack.c.b16 %v119, %v118
    %v138 = vunpack.c.l.b16 %v95
    %v139 = vunpack.c.l.b16 %v96
    %v140 = vunpack.c.l.b16 %v97
    %v141 = vunpack.c.l.b16 %v98
    %v142 = vunpack.c.l.b16 %v99
    %v143 = vunpack.c.l.b16 %v100
    %v144 = vunpack.c.l.b16 %v101
    %v145 = vunpack.c.l.b16 %v102
    %v146 = vunpack.c.l.b16 %v103
    %v147 = vunpack.c.l.b16 %v104
    %v148 = vunpack.c.l.b16 %v105
    %v149 = vunpack.c.l.b16 %v106
    %v150 = vunpack.c.l.b16 %v107
    %v151 = vunpack.c.l.b16 %v108
    %v152 = vunpack.c.l.b16 %v109
    %v153 = vunpack.c.l.b16 %v110
    %v154 = vpack.c.b16 %v139, %v138
    %v155 = vpack.c.b16 %v141, %v140
    %v156 = vpack.c.b16 %v143, %v142
    %v157 = vpack.c.b16 %v145, %v144
    %v158 = vpack.c.b16 %v147, %v146
    %v159 = vpack.c.b16 %v149, %v148
    %v160 = vpack.c.b16 %v151, %v150
    %v161 = vpack.c.b16 %v153, %v152
    %170 = vmatprep.subr.bf16.mxu0 0
    %171 = vmatpush1.bf16.msra.mxu0 %v161
    %172 = vmatprep.subr.bf16.mxu0 0
    %173 = vmatpush1.bf16.msra.mxu0 %v160
    %174 = vmatprep.subr.bf16.mxu0 0
    %175 = vmatpush1.bf16.msra.mxu0 %v159
    %176 = vmatprep.subr.bf16.mxu0 0
    %177 = vmatpush1.bf16.msra.mxu0 %v158
    %178 = vmatprep.subr.bf16.mxu0 0
    %179 = vmatpush1.bf16.msra.mxu0 %v157
    %180 = vmatprep.subr.bf16.mxu0 0
    %181 = vmatpush1.bf16.msra.mxu0 %v156
    %182 = vmatprep.subr.bf16.mxu0 0
    %183 = vmatpush1.bf16.msra.mxu0 %v155
    %184 = vmatprep.subr.bf16.mxu0 0
    %185 = vmatpush1.bf16.msra.mxu0 %v154
    %186 = vmatprep.subr.bf16.mxu0 0
    %187 = vmatpush2.bf16.msra.mxu0 0
    %188 = vmatprep.subr.bf16.mxu0 0
    %189 = vmatpush2.bf16.msra.mxu0 0
    %190 = vmatprep.subr.bf16.mxu0 0
    %191 = vmatpush2.bf16.msra.mxu0 0
    %192 = vmatprep.subr.bf16.mxu0 0
    %193 = vmatpush2.bf16.msra.mxu0 0
    %194 = vmatprep.subr.bf16.mxu0 0
    %195 = vmatpush2.bf16.msra.mxu0 0
    %196 = vmatprep.subr.bf16.mxu0 0
    %197 = vmatpush2.bf16.msra.mxu0 0
    %198 = vmatprep.subr.bf16.mxu0 0
    %199 = vmatpush2.bf16.msra.mxu0 0
    %200 = vmatprep.subr.bf16.mxu0 0
    %201 = vmatpush2.bf16.msra.mxu0 0
    %202 = vmatprep.mubr.bf16.mxu0 0
    %203 = vmatmul.mubr.bf16.gmra.mxu0 %v120
    %v204 = vpop.f32.mrf.mxu0
    %v205 = vadd.f32 %v115, %v204
    %v206 = vpop.f32.mrf.mxu0
    %v207 = vpop.f32.mrf.mxu0
    %v208 = vadd.f32 %v115, %v207
    %v209 = vpop.f32.mrf.mxu0
    %210 = vdwg.mxu0
    %vm211 = vcmp.ge.f32.partialorder %v205, 0.0
    %vm212 = vcmp.ge.f32.partialorder %v208, 0.0
    %v213 = vmul.f32 %v205, 0.01
    %v214 = vmul.f32 %v208, 0.01
    %v215 = vsel %vm211, %v205, %v213
    %v216 = vsel %vm212, %v208, %v214
    %v217 = vpack.c.bf16 %v216, %v215
    %v218 = vld [vmem:[#allocation7] sm:$0xf]
    %v219 = vld [vmem:[#allocation7 + $0x4] sm:$0xf]
    %v220 = vld [vmem:[#allocation7 + $0x8] sm:$0xf]
    %v221 = vld [vmem:[#allocation7 + $0xc] sm:$0xf]
    %v222 = vld [vmem:[#allocation7 + $0x10] sm:$0xf]
    %v223 = vld [vmem:[#allocation7 + $0x14] sm:$0xf]
    %v224 = vld [vmem:[#allocation7 + $0x18] sm:$0xf]
    %v225 = vld [vmem:[#allocation7 + $0x1c] sm:$0xf]
    %v226 = vld [vmem:[#allocation7 + $0x20] sm:$0xf]
    %v227 = vld [vmem:[#allocation7 + $0x24] sm:$0xf]
    %v228 = vld [vmem:[#allocation7 + $0x28] sm:$0xf]
    %v229 = vld [vmem:[#allocation7 + $0x2c] sm:$0xf]
    %v230 = vld [vmem:[#allocation7 + $0x30] sm:$0xf]
    %v231 = vld [vmem:[#allocation7 + $0x34] sm:$0xf]
    %v232 = vld [vmem:[#allocation7 + $0x38] sm:$0xf]
    %v233 = vld [vmem:[#allocation7 + $0x3c] sm:$0xf]
    %v234 = vld [vmem:[%s5 + $0x1] sm:$0x1]
    %v235 = vlaneseq
    %v236 = vshrl.u32 %v235, 7
    %v237 = vsub.s32 0, %v236
    %v238 = vrot.slane %v234, %v237
    %v255 = vunpack.c.l.b16 %v218
    %v256 = vunpack.c.l.b16 %v219
    %v257 = vunpack.c.l.b16 %v220
    %v258 = vunpack.c.l.b16 %v221
    %v259 = vunpack.c.l.b16 %v222
    %v260 = vunpack.c.l.b16 %v223
    %v261 = vunpack.c.l.b16 %v224
    %v262 = vunpack.c.l.b16 %v225
    %v263 = vunpack.c.l.b16 %v226
    %v264 = vunpack.c.l.b16 %v227
    %v265 = vunpack.c.l.b16 %v228
    %v266 = vunpack.c.l.b16 %v229
    %v267 = vunpack.c.l.b16 %v230
    %v268 = vunpack.c.l.b16 %v231
    %v269 = vunpack.c.l.b16 %v232
    %v270 = vunpack.c.l.b16 %v233
    %v271 = vpack.c.b16 %v256, %v255
    %v272 = vpack.c.b16 %v258, %v257
    %v273 = vpack.c.b16 %v260, %v259
    %v274 = vpack.c.b16 %v262, %v261
    %v275 = vpack.c.b16 %v264, %v263
    %v276 = vpack.c.b16 %v266, %v265
    %v277 = vpack.c.b16 %v268, %v267
    %v278 = vpack.c.b16 %v270, %v269
    %287 = vmatprep.subr.bf16.mxu0 0
    %288 = vmatpush1.bf16.msra.mxu0 %v278
    %289 = vmatprep.subr.bf16.mxu0 0
    %290 = vmatpush1.bf16.msra.mxu0 %v277
    %291 = vmatprep.subr.bf16.mxu0 0
    %292 = vmatpush1.bf16.msra.mxu0 %v276
    %293 = vmatprep.subr.bf16.mxu0 0
    %294 = vmatpush1.bf16.msra.mxu0 %v275
    %295 = vmatprep.subr.bf16.mxu0 0
    %296 = vmatpush1.bf16.msra.mxu0 %v274
    %297 = vmatprep.subr.bf16.mxu0 0
    %298 = vmatpush1.bf16.msra.mxu0 %v273
    %299 = vmatprep.subr.bf16.mxu0 0
    %300 = vmatpush1.bf16.msra.mxu0 %v272
    %301 = vmatprep.subr.bf16.mxu0 0
    %302 = vmatpush1.bf16.msra.mxu0 %v271
    %303 = vmatprep.subr.bf16.mxu0 0
    %304 = vmatpush2.bf16.msra.mxu0 0
    %305 = vmatprep.subr.bf16.mxu0 0
    %306 = vmatpush2.bf16.msra.mxu0 0
    %307 = vmatprep.subr.bf16.mxu0 0
    %308 = vmatpush2.bf16.msra.mxu0 0
    %309 = vmatprep.subr.bf16.mxu0 0
    %310 = vmatpush2.bf16.msra.mxu0 0
    %311 = vmatprep.subr.bf16.mxu0 0
    %312 = vmatpush2.bf16.msra.mxu0 0
    %313 = vmatprep.subr.bf16.mxu0 0
    %314 = vmatpush2.bf16.msra.mxu0 0
    %315 = vmatprep.subr.bf16.mxu0 0
    %316 = vmatpush2.bf16.msra.mxu0 0
    %317 = vmatprep.subr.bf16.mxu0 0
    %318 = vmatpush2.bf16.msra.mxu0 0
    %319 = vmatprep.mubr.bf16.mxu0 0
    %320 = vmatmul.mubr.bf16.gmra.mxu0 %v217
    %v321 = vpop.f32.mrf.mxu0
    %v322 = vadd.f32 %v238, %v321
    %v323 = vpop.f32.mrf.mxu0
    %v324 = vpop.f32.mrf.mxu0
    %v325 = vadd.f32 %v238, %v324
    %v326 = vpop.f32.mrf.mxu0
    %327 = vdwg.mxu0
    %vm328 = vcmp.ge.f32.partialorder %v322, 0.0
    %vm329 = vcmp.ge.f32.partialorder %v325, 0.0
    %v330 = vmul.f32 %v322, 0.01
    %v331 = vmul.f32 %v325, 0.01
    %v332 = vsel %vm328, %v322, %v330
    %v333 = vsel %vm329, %v325, %v331
    %v334 = vpack.c.bf16 %v333, %v332
    %v335 = vld [vmem:[#allocation8] sm:$0xf]
    %v336 = vld [vmem:[#allocation8 + $0x4] sm:$0xf]
    %v337 = vld [vmem:[#allocation8 + $0x8] sm:$0xf]
    %v338 = vld [vmem:[#allocation8 + $0xc] sm:$0xf]
    %v339 = vld [vmem:[#allocation8 + $0x10] sm:$0xf]
    %v340 = vld [vmem:[#allocation8 + $0x14] sm:$0xf]
    %v341 = vld [vmem:[#allocation8 + $0x18] sm:$0xf]
    %v342 = vld [vmem:[#allocation8 + $0x1c] sm:$0xf]
    %v343 = vld [vmem:[#allocation8 + $0x20] sm:$0xf]
    %v344 = vld [vmem:[#allocation8 + $0x24] sm:$0xf]
    %v345 = vld [vmem:[#allocation8 + $0x28] sm:$0xf]
    %v346 = vld [vmem:[#allocation8 + $0x2c] sm:$0xf]
    %v347 = vld [vmem:[#allocation8 + $0x30] sm:$0xf]
    %v348 = vld [vmem:[#allocation8 + $0x34] sm:$0xf]
    %v349 = vld [vmem:[#allocation8 + $0x38] sm:$0xf]
    %v350 = vld [vmem:[#allocation8 + $0x3c] sm:$0xf]
    %v351 = vld [vmem:[%s5 + $0x2] sm:$0x1]
    %v352 = vlaneseq
    %v353 = vshrl.u32 %v352, 7
    %v354 = vsub.s32 0, %v353
    %v355 = vrot.slane %v351, %v354
    %v372 = vunpack.c.l.b16 %v335
    %v373 = vunpack.c.l.b16 %v336
    %v374 = vunpack.c.l.b16 %v337
    %v375 = vunpack.c.l.b16 %v338
    %v376 = vunpack.c.l.b16 %v339
    %v377 = vunpack.c.l.b16 %v340
    %v378 = vunpack.c.l.b16 %v341
    %v379 = vunpack.c.l.b16 %v342
    %v380 = vunpack.c.l.b16 %v343
    %v381 = vunpack.c.l.b16 %v344
    %v382 = vunpack.c.l.b16 %v345
    %v383 = vunpack.c.l.b16 %v346
    %v384 = vunpack.c.l.b16 %v347
    %v385 = vunpack.c.l.b16 %v348
    %v386 = vunpack.c.l.b16 %v349
    %v387 = vunpack.c.l.b16 %v350
    %v388 = vpack.c.b16 %v373, %v372
    %v389 = vpack.c.b16 %v375, %v374
    %v390 = vpack.c.b16 %v377, %v376
    %v391 = vpack.c.b16 %v379, %v378
    %v392 = vpack.c.b16 %v381, %v380
    %v393 = vpack.c.b16 %v383, %v382
    %v394 = vpack.c.b16 %v385, %v384
    %v395 = vpack.c.b16 %v387, %v386
    %404 = vmatprep.subr.bf16.mxu0 0
    %405 = vmatpush1.bf16.msra.mxu0 %v395
    %406 = vmatprep.subr.bf16.mxu0 0
    %407 = vmatpush1.bf16.msra.mxu0 %v394
    %408 = vmatprep.subr.bf16.mxu0 0
    %409 = vmatpush1.bf16.msra.mxu0 %v393
    %410 = vmatprep.subr.bf16.mxu0 0
    %411 = vmatpush1.bf16.msra.mxu0 %v392
    %412 = vmatprep.subr.bf16.mxu0 0
    %413 = vmatpush1.bf16.msra.mxu0 %v391
    %414 = vmatprep.subr.bf16.mxu0 0
    %415 = vmatpush1.bf16.msra.mxu0 %v390
    %416 = vmatprep.subr.bf16.mxu0 0
    %417 = vmatpush1.bf16.msra.mxu0 %v389
    %418 = vmatprep.subr.bf16.mxu0 0
    %419 = vmatpush1.bf16.msra.mxu0 %v388
    %420 = vmatprep.subr.bf16.mxu0 0
    %421 = vmatpush2.bf16.msra.mxu0 0
    %422 = vmatprep.subr.bf16.mxu0 0
    %423 = vmatpush2.bf16.msra.mxu0 0
    %424 = vmatprep.subr.bf16.mxu0 0
    %425 = vmatpush2.bf16.msra.mxu0 0
    %426 = vmatprep.subr.bf16.mxu0 0
    %427 = vmatpush2.bf16.msra.mxu0 0
    %428 = vmatprep.subr.bf16.mxu0 0
    %429 = vmatpush2.bf16.msra.mxu0 0
    %430 = vmatprep.subr.bf16.mxu0 0
    %431 = vmatpush2.bf16.msra.mxu0 0
    %432 = vmatprep.subr.bf16.mxu0 0
    %433 = vmatpush2.bf16.msra.mxu0 0
    %434 = vmatprep.subr.bf16.mxu0 0
    %435 = vmatpush2.bf16.msra.mxu0 0
    %436 = vmatprep.mubr.bf16.mxu0 0
    %437 = vmatmul.mubr.bf16.gmra.mxu0 %v334
    %v438 = vpop.f32.mrf.mxu0
    %v439 = vadd.f32 %v355, %v438
    %v440 = vpop.f32.mrf.mxu0
    %v441 = vpop.f32.mrf.mxu0
    %v442 = vadd.f32 %v355, %v441
    %v443 = vpop.f32.mrf.mxu0
    %444 = vdwg.mxu0
    %vm445 = vcmp.ge.f32.partialorder %v439, 0.0
    %vm446 = vcmp.ge.f32.partialorder %v442, 0.0
    %v447 = vmul.f32 %v439, 0.01
    %v448 = vmul.f32 %v442, 0.01
    %v449 = vsel %vm445, %v439, %v447
    %v450 = vsel %vm446, %v442, %v448
    %v451 = vpack.c.bf16 %v450, %v449
    %v452 = vld [vmem:[#allocation10] sm:$0xf]
    %v453 = vld [vmem:[#allocation10 + $0x4] sm:$0xf]
    %v454 = vld [vmem:[#allocation10 + $0x8] sm:$0xf]
    %v455 = vld [vmem:[#allocation10 + $0xc] sm:$0xf]
    %v456 = vld [vmem:[#allocation10 + $0x10] sm:$0xf]
    %v457 = vld [vmem:[#allocation10 + $0x14] sm:$0xf]
    %v458 = vld [vmem:[#allocation10 + $0x18] sm:$0xf]
    %v459 = vld [vmem:[#allocation10 + $0x1c] sm:$0xf]
    %v460 = vld [vmem:[#allocation10 + $0x20] sm:$0xf]
    %v461 = vld [vmem:[#allocation10 + $0x24] sm:$0xf]
    %v462 = vld [vmem:[#allocation10 + $0x28] sm:$0xf]
    %v463 = vld [vmem:[#allocation10 + $0x2c] sm:$0xf]
    %v464 = vld [vmem:[#allocation10 + $0x30] sm:$0xf]
    %v465 = vld [vmem:[#allocation10 + $0x34] sm:$0xf]
    %v466 = vld [vmem:[#allocation10 + $0x38] sm:$0xf]
    %v467 = vld [vmem:[#allocation10 + $0x3c] sm:$0xf]
    %v468 = vld [vmem:[%s5 + $0x3] sm:$0x1]
    %v469 = vlaneseq
    %v470 = vshrl.u32 %v469, 7
    %v471 = vsub.s32 0, %v470
    %v472 = vrot.slane %v468, %v471
    %v489 = vunpack.c.l.b16 %v452
    %v490 = vunpack.c.l.b16 %v453
    %v491 = vunpack.c.l.b16 %v454
    %v492 = vunpack.c.l.b16 %v455
    %v493 = vunpack.c.l.b16 %v456
    %v494 = vunpack.c.l.b16 %v457
    %v495 = vunpack.c.l.b16 %v458
    %v496 = vunpack.c.l.b16 %v459
    %v497 = vunpack.c.l.b16 %v460
    %v498 = vunpack.c.l.b16 %v461
    %v499 = vunpack.c.l.b16 %v462
    %v500 = vunpack.c.l.b16 %v463
    %v501 = vunpack.c.l.b16 %v464
    %v502 = vunpack.c.l.b16 %v465
    %v503 = vunpack.c.l.b16 %v466
    %v504 = vunpack.c.l.b16 %v467
    %v505 = vpack.c.b16 %v490, %v489
    %v506 = vpack.c.b16 %v492, %v491
    %v507 = vpack.c.b16 %v494, %v493
    %v508 = vpack.c.b16 %v496, %v495
    %v509 = vpack.c.b16 %v498, %v497
    %v510 = vpack.c.b16 %v500, %v499
    %v511 = vpack.c.b16 %v502, %v501
    %v512 = vpack.c.b16 %v504, %v503
    %521 = vmatprep.subr.bf16.mxu0 0
    %522 = vmatpush1.bf16.msra.mxu0 %v512
    %523 = vmatprep.subr.bf16.mxu0 0
    %524 = vmatpush1.bf16.msra.mxu0 %v511
    %525 = vmatprep.subr.bf16.mxu0 0
    %526 = vmatpush1.bf16.msra.mxu0 %v510
    %527 = vmatprep.subr.bf16.mxu0 0
    %528 = vmatpush1.bf16.msra.mxu0 %v509
    %529 = vmatprep.subr.bf16.mxu0 0
    %530 = vmatpush1.bf16.msra.mxu0 %v508
    %531 = vmatprep.subr.bf16.mxu0 0
    %532 = vmatpush1.bf16.msra.mxu0 %v507
    %533 = vmatprep.subr.bf16.mxu0 0
    %534 = vmatpush1.bf16.msra.mxu0 %v506
    %535 = vmatprep.subr.bf16.mxu0 0
    %536 = vmatpush1.bf16.msra.mxu0 %v505
    %537 = vmatprep.subr.bf16.mxu0 0
    %538 = vmatpush2.bf16.msra.mxu0 0
    %539 = vmatprep.subr.bf16.mxu0 0
    %540 = vmatpush2.bf16.msra.mxu0 0
    %541 = vmatprep.subr.bf16.mxu0 0
    %542 = vmatpush2.bf16.msra.mxu0 0
    %543 = vmatprep.subr.bf16.mxu0 0
    %544 = vmatpush2.bf16.msra.mxu0 0
    %545 = vmatprep.subr.bf16.mxu0 0
    %546 = vmatpush2.bf16.msra.mxu0 0
    %547 = vmatprep.subr.bf16.mxu0 0
    %548 = vmatpush2.bf16.msra.mxu0 0
    %549 = vmatprep.subr.bf16.mxu0 0
    %550 = vmatpush2.bf16.msra.mxu0 0
    %551 = vmatprep.subr.bf16.mxu0 0
    %552 = vmatpush2.bf16.msra.mxu0 0
    %553 = vmatprep.mubr.bf16.mxu0 0
    %554 = vmatmul.mubr.bf16.gmra.mxu0 %v451
    %v555 = vpop.f32.mrf.mxu0
    %v556 = vadd.f32 %v472, %v555
    %v557 = vpop.f32.mrf.mxu0
    %v558 = vpop.f32.mrf.mxu0
    %v559 = vadd.f32 %v472, %v558
    %v560 = vpop.f32.mrf.mxu0
    %561 = vdwg.mxu0
    %562 = vst [vmem:[#allocation11] sm:$0xff] %v556
    %563 = vst [vmem:[#allocation11 + $0x8] sm:$0xff] %v559
    // Predicated region
    $region46: #{tpu_custom_call.1} parent=1 // pred_check
      _
    $region47: #{tpu_custom_call.1} parent=1 // pred_check_branch
      %565 = sbr.rel (0) target = $region49
    $region48: #{tpu_custom_call.1} parent=1 // pred_region
      %s567 = ssub.s32 256, 256
      %568 = vsyncadd [#allocation4], %s567
      %s569 = sshll.u32 [#allocation11], 4
      %s570 = int_to_ptr.vmem [resolvable:$true] %s569
      %575 = dma.vmem_to_hbm [thread:$0]  %s570, 256, %s6, [#allocation4], 128, 128, 8
    $region49: #{tpu_custom_call.1} parent=1 // pred_fallthru
      _
    // Predicated region
    $region50: #{tpu_custom_call.1} parent=1 // pred_check
      _
    $region51: #{tpu_custom_call.1} parent=1 // pred_check_branch
      %577 = sbr.rel (0) target = $region53
    $region52: #{tpu_custom_call.1} parent=1 // pred_region
      %578 = dma.done [#allocation4], 256
    $region53: #{tpu_custom_call.1} parent=1 // pred_fallthru
      _
    %579 = vsyncpa [#allocation3], 1
    %580 = vsyncpa [#allocation6], 1
    %581 = vsyncpa [#allocation9], 1
    %582 = vsyncpa [#allocation4], 1

</llo_original>
